<compile_context>
chip_gen: v7x
topology: tpu7x:2x2x1
jax: 0.10.0
libtpu: 0.0.40
codegen_flags: <defaults>
</compile_context>

<pallas_src>
import jax
import jax.numpy as jnp
from jax.experimental import pallas as pl
from jax.experimental.pallas import tpu as pltpu


_LANE = 128
_SUBLANE = 8
_MAX_TC = 256 * _LANE               # 32768 cols per column block
_MIN_PALLAS_BYTES = 2 * 1024 * 1024  # below this, plain jnp is faster


def _vmem_budgets():
    """Return (block_budget_bytes, vmem_limit_bytes) for this TPU generation."""
    cap = None
    try:
        info = pltpu.get_tpu_info()
        cap = getattr(info, "vmem_capacity_bytes", None)
    except Exception:
        cap = None
    if cap is None:
        cap = 64 * 1024 * 1024  # conservative: assume v7x-class per-TC VMEM
    if cap >= 100 * 1024 * 1024:
        # v5e / v6e: 128 MiB physical VMEM -> bigger blocks, fewer grid steps.
        return 64 * 1024 * 1024, 100 * 1024 * 1024
    # v7x: 64 MiB per TensorCore -> leave ~8 MiB headroom for compiler scratch.
    return 28 * 1024 * 1024, 48 * 1024 * 1024


def _choose_tiles(B, NN_pad, in_itemsize, out_itemsize, static_itemsize,
                  block_budget):
    """Pick (tb, tc) block sizes for the flattened (B, NN_pad) view."""
    tc = min(NN_pad, _MAX_TC)
    # Static (dist/trans) blocks pad to 8 sublanes each and are double-buffered.
    static_bytes = 2 * 2 * _SUBLANE * tc * static_itemsize
    # Steady-state pipeline: double-buffered dyn-in block + double-buffered out block.
    per_row_bytes = 2 * tc * (in_itemsize + out_itemsize)
    avail = max(block_budget - static_bytes, per_row_bytes * _SUBLANE)
    max_rows = max(1, avail // per_row_bytes)
    if max_rows >= B:
        tb = B                                           # full batch dim (always legal)
    else:
        tb = max(_SUBLANE, (max_rows // _SUBLANE) * _SUBLANE)  # multiple of 8
    return int(tb), int(tc)


def _mgf_kernel(ab_ref, a_dist_ref, a_trans_ref, a_dyn_ref, out_ref):
    # ab_ref:                  SMEM (2,)     -> [alpha, beta]
    # a_dist_ref, a_trans_ref: VMEM (1, TC)  column block of the static graphs
    # a_dyn_ref, out_ref:      VMEM (TB, TC) column block of the dynamic graph
    f32 = jnp.float32
    alpha = ab_ref[0]
    beta = ab_ref[1]
    gamma = 1.0 - alpha - beta

    # Static fusion recomputed inline (cheap, hidden under the HBM stream);
    # broadcasting (1, TC) against (TB, TC).  In-kernel cast keeps the HBM
    # read at the input's native width (bf16 inputs halve DMA-in bytes).
    fused_static = (alpha * a_dist_ref[...].astype(f32)
                    + beta * a_trans_ref[...].astype(f32))
    out_ref[...] = fused_static + gamma * a_dyn_ref[...].astype(f32)


def _pad_cols(x2, nn, nn_pad):
    if nn_pad == nn:
        return x2
    return jnp.pad(x2, ((0, 0), (0, nn_pad - nn)))


def multi_graph_fusion(alpha, beta, a_dist, a_trans, a_dyn, *,
                       tile_rows=None, tile_cols=None,
                       use_pallas=None, alias_dyn_output=False):
    """alpha, beta: scalars; a_dist, a_trans: (N, N); a_dyn: (B, N, N) -> (B, N, N) f32."""
    B, N, _ = a_dyn.shape
    NN = N * N
    f32 = jnp.float32
    out_dtype = f32  # explicit: matches PyTorch promotion with f32 alpha/beta params

    # Size-based dispatch: for tiny problems the pallas_call launch overhead
    # dominates and XLA already fuses this elementwise op at roofline.
    if use_pallas is None:
        use_pallas = B * NN * jnp.dtype(a_dyn.dtype).itemsize >= _MIN_PALLAS_BYTES
    if not use_pallas:
        a = jnp.asarray(alpha, f32)
        b = jnp.asarray(beta, f32)
        return (a * a_dist.astype(f32) + b * a_trans.astype(f32)
                + (1.0 - a - b) * a_dyn.astype(f32))

    # Lane-dense flattened views, padded so the last dim is a multiple of 128
    # (unmasked full-lane stores).
    NN_pad = ((NN + _LANE - 1) // _LANE) * _LANE
    dyn2 = _pad_cols(a_dyn.reshape(B, NN), NN, NN_pad)
    dist2 = _pad_cols(a_dist.reshape(1, NN), NN, NN_pad)
    trans2 = _pad_cols(a_trans.reshape(1, NN), NN, NN_pad)

    ab = jnp.asarray([alpha, beta], dtype=f32)

    block_budget, vmem_limit = _vmem_budgets()
    tb, tc = _choose_tiles(
        B, NN_pad,
        in_itemsize=jnp.dtype(dyn2.dtype).itemsize,
        out_itemsize=jnp.dtype(out_dtype).itemsize,
        static_itemsize=jnp.dtype(dist2.dtype).itemsize,
        block_budget=block_budget)

    # Guarded user overrides (must respect the (8, 128) BlockSpec rule).
    if tile_cols is not None:
        if tile_cols != NN_pad and tile_cols % _LANE != 0:
            raise ValueError("tile_cols must be a multiple of 128 or equal the "
                             "padded N*N")
        tc = int(tile_cols)
    if tile_rows is not None:
        tr = int(tile_rows)
        if tr < B and tr % _SUBLANE != 0:
            raise ValueError("tile_rows must be a multiple of 8 (or >= batch)")
        tb = min(tr, B)

    grid = (pl.cdiv(NN_pad, tc), pl.cdiv(B, tb))  # (column blocks, batch blocks)

    io_aliases = {}
    if alias_dyn_output and dyn2.dtype == out_dtype:
        # Reuse the A_dyn buffer for the output (caller must not need A_dyn).
        io_aliases = {3: 0}

    out2 = pl.pallas_call(
        _mgf_kernel,
        out_shape=jax.ShapeDtypeStruct((B, NN_pad), out_dtype),
        grid_spec=pltpu.PrefetchScalarGridSpec(
            num_scalar_prefetch=0,
            grid=grid,
            in_specs=[
                pl.BlockSpec(memory_space=pltpu.SMEM),            # [alpha, beta]
                pl.BlockSpec((1, tc), lambda c, b: (0, c)),       # A_dist column block
                pl.BlockSpec((1, tc), lambda c, b: (0, c)),       # A_trans column block
                pl.BlockSpec((tb, tc), lambda c, b: (b, c)),      # A_dyn block
            ],
            out_specs=pl.BlockSpec((tb, tc), lambda c, b: (b, c)),
        ),
        compiler_params=pltpu.CompilerParams(
            # No cross-step carry -> both axes parallel (megacore sharding on v7x).
            dimension_semantics=("parallel", "parallel"),
            vmem_limit_bytes=vmem_limit,
        ),
        input_output_aliases=io_aliases,
    )(ab, dist2, trans2, dyn2)

    if NN_pad != NN:
        out2 = out2[:, :NN]
    return out2.reshape(B, N, N)


def _reference(alpha, beta, a_dist, a_trans, a_dyn):
    a = jnp.asarray(alpha, jnp.float32)
    b = jnp.asarray(beta, jnp.float32)
    return (a * a_dist.astype(jnp.float32) + b * a_trans.astype(jnp.float32)
            + (1.0 - a - b) * a_dyn.astype(jnp.float32))


if __name__ == "__main__":
    init_alpha = jnp.float32(0.33)
    init_beta = jnp.float32(0.33)

    key = jax.random.PRNGKey(0)
    k1, k2, k3, k4, k5 = jax.random.split(key, 5)

    # Test 1: module-scale shapes (B=2 dynamic graphs over N=16 stations).
    # Force the Pallas path (the auto-dispatch would use plain jnp at this size).
    N, B = 16, 2
    a_dist = jax.random.uniform(k1, (N, N), dtype=jnp.float32)
    a_trans = jax.random.uniform(k2, (N, N), dtype=jnp.float32)
    a_dyn = jax.random.uniform(k3, (B, N, N), dtype=jnp.float32)

    out = multi_graph_fusion(init_alpha, init_beta, a_dist, a_trans, a_dyn,
                             use_pallas=True)
    jax.block_until_ready(out)
    ref = _reference(init_alpha, init_beta, a_dist, a_trans, a_dyn)
    assert out.shape == (B, N, N)
    assert jnp.allclose(out, ref, atol=1e-6), "mismatch vs reference (test 1)"

    # Test 2: forced small tiles (tb=8, tc=128) on B=24 so the multi-block grid
    # and the (1, TC) static-graph broadcast path are exercised.
    B2 = 24
    a_dyn2 = jax.random.uniform(k4, (B2, N, N), dtype=jnp.float32)
    out2 = multi_graph_fusion(init_alpha, init_beta, a_dist, a_trans, a_dyn2,
                              tile_rows=8, tile_cols=128, use_pallas=True)
    jax.block_until_ready(out2)
    ref2 = _reference(init_alpha, init_beta, a_dist, a_trans, a_dyn2)
    assert out2.shape == (B2, N, N)
    assert jnp.allclose(out2, ref2, atol=1e-6), "mismatch vs reference (test 2)"

    # Test 3: bf16 dynamic graph (native-dtype pass-through + in-kernel cast)
    # and non-128-aligned N*N (N=20 -> 400, padded to 512 and sliced back).
    N3, B3 = 20, 4
    a_dist3 = jax.random.uniform(k1, (N3, N3), dtype=jnp.float32)
    a_trans3 = jax.random.uniform(k2, (N3, N3), dtype=jnp.float32)
    a_dyn3 = jax.random.uniform(k5, (B3, N3, N3), dtype=jnp.float32).astype(jnp.bfloat16)
    out3 = multi_graph_fusion(init_alpha, init_beta, a_dist3, a_trans3, a_dyn3,
                              use_pallas=True)
    jax.block_until_ready(out3)
    ref3 = _reference(init_alpha, init_beta, a_dist3, a_trans3, a_dyn3)
    assert out3.shape == (B3, N3, N3)
    assert jnp.allclose(out3, ref3, atol=2e-2), "mismatch vs reference (test 3)"

    # Test 4: auto size-dispatch (tiny problem -> plain jnp path).
    out4 = multi_graph_fusion(init_alpha, init_beta, a_dist, a_trans, a_dyn)
    jax.block_until_ready(out4)
    assert jnp.allclose(out4, ref, atol=1e-6), "mismatch vs reference (test 4)"

    print("KERNEL_OK")
</pallas_src>

<mosaic_0001>
module attributes {stable_mosaic.version = 11 : i64} {
  func.func @_mgf_kernel(%arg0: i32, %arg1: i32, %arg2: memref<2xf32, #tpu.memory_space<smem>>, %arg3: memref<1x256xf32, #tpu.memory_space<vmem>>, %arg4: memref<1x256xf32, #tpu.memory_space<vmem>>, %arg5: memref<2x256xf32, #tpu.memory_space<vmem>>, %arg6: memref<2x256xf32, #tpu.memory_space<vmem>>) attributes {dimension_semantics = [#tpu.dimension_semantics<parallel>, #tpu.dimension_semantics<parallel>], iteration_bounds = array<i64: 1, 1>, scalar_prefetch = 0 : i64, scratch_operands = 0 : i64, tpu.core_type = #tpu.core_type<tc>, window_params = [{transform_indices = @transform_0, window_bounds = array<i64: 2>}, {transform_indices = @transform_1, window_bounds = array<i64: 1, 256>}, {transform_indices = @transform_2, window_bounds = array<i64: 1, 256>}, {transform_indices = @transform_3, window_bounds = array<i64: 2, 256>}, {transform_indices = @transform_4, window_bounds = array<i64: 2, 256>}]} {
    %c0 = arith.constant 0 : index
    %0 = memref.load %arg2[%c0] : memref<2xf32, #tpu.memory_space<smem>>
    %c1 = arith.constant 1 : index
    %1 = memref.load %arg2[%c1] : memref<2xf32, #tpu.memory_space<smem>>
    %cst = arith.constant 1.000000e+00 : f32
    %2 = arith.subf %cst, %0 : f32
    %3 = arith.subf %2, %1 : f32
    %c0_0 = arith.constant 0 : index
    %c0_1 = arith.constant 0 : index
    %4 = vector.load %arg3[%c0_0, %c0_1] : memref<1x256xf32, #tpu.memory_space<vmem>>, vector<1x256xf32>
    %5 = vector.broadcast %0 : f32 to vector<1x256xf32>
    %6 = arith.mulf %5, %4 : vector<1x256xf32>
    %c0_2 = arith.constant 0 : index
    %c0_3 = arith.constant 0 : index
    %7 = vector.load %arg4[%c0_2, %c0_3] : memref<1x256xf32, #tpu.memory_space<vmem>>, vector<1x256xf32>
    %8 = vector.broadcast %1 : f32 to vector<1x256xf32>
    %9 = arith.mulf %8, %7 : vector<1x256xf32>
    %10 = arith.addf %6, %9 : vector<1x256xf32>
    %c0_4 = arith.constant 0 : index
    %c0_5 = arith.constant 0 : index
    %11 = vector.load %arg5[%c0_4, %c0_5] : memref<2x256xf32, #tpu.memory_space<vmem>>, vector<2x256xf32>
    %12 = vector.broadcast %3 : f32 to vector<2x256xf32>
    %13 = arith.mulf %12, %11 : vector<2x256xf32>
    %14 = vector.broadcast %10 : vector<1x256xf32> to vector<2x256xf32>
    %15 = arith.addf %14, %13 : vector<2x256xf32>
    %c0_6 = arith.constant 0 : index
    %c0_7 = arith.constant 0 : index
    %16 = vector.load %arg6[%c0_6, %c0_7] : memref<2x256xf32, #tpu.memory_space<vmem>>, vector<2x256xf32>
    tpu.vector_store %arg6[%c0_6, %c0_7], %15 {strides = array<i32>} : memref<2x256xf32, #tpu.memory_space<vmem>>, vector<2x256xf32>,
    return
  }
  func.func @transform_0(%arg0: i32, %arg1: i32) -> i32 {
    %c0_i32 = arith.constant 0 : i32
    %c0_i32_0 = arith.constant 0 : i32
    return %c0_i32 : i32
  }
  func.func @transform_1(%arg0: i32, %arg1: i32) -> (i32, i32) {
    %c0_i32 = arith.constant 0 : i32
    %c0_i32_0 = arith.constant 0 : i32
    return %c0_i32, %arg0 : i32, i32
  }
  func.func @transform_2(%arg0: i32, %arg1: i32) -> (i32, i32) {
    %c0_i32 = arith.constant 0 : i32
    %c0_i32_0 = arith.constant 0 : i32
    return %c0_i32, %arg0 : i32, i32
  }
  func.func @transform_3(%arg0: i32, %arg1: i32) -> (i32, i32) {
    %c0_i32 = arith.constant 0 : i32
    return %arg1, %arg0 : i32, i32
  }
  func.func @transform_4(%arg0: i32, %arg1: i32) -> (i32, i32) {
    %c0_i32 = arith.constant 0 : i32
    return %arg1, %arg0 : i32, i32
  }
}

</mosaic_0001>

<llo_original>
// kernel: tpu_custom_call.1
$region0: #{tpu_custom_call.1}
  #allocation0 [shape = 'u32[]', space=smem, size = 0x4, offset = 0x4, fixed_abs, tag = 'smem constant byte address 0x4 - core index']
  #allocation1 [shape = 'u32[144,128]{1,0:T(1,128)}', space=vmem, size = 0x12000, scoped, tag = 'internal scratch']
  %s0 = inlined_call_operand.hbm [shape: f32[2], index: 0, kind: input, shape index: {}]
  %s1 = inlined_call_operand.vmem [shape: f32[1,256], index: 1, kind: input, shape index: {}]
  %s2 = inlined_call_operand.hbm [shape: f32[1,256], index: 2, kind: input, shape index: {}]
  %s3 = inlined_call_operand.vmem [shape: f32[2,256], index: 3, kind: input, shape index: {}]
  %s4 = inlined_call_operand.hbm [shape: f32[2,256], index: 4, kind: output, shape index: {}]
  %s5 = sld [smem:[#allocation0]]
  $region34: #{tpu_custom_call.1} parent=0
    _
  %s7 = ssub.s32 1, %s5
  %s8 = scalar_select 0, %s7, %s5
  $region1: #{tpu_custom_call.1} parent=0
    #allocation2 [shape = 'u8[512]{0}', space=smem, size = 0x200, scoped, tag = 'input window, operand 0, single buffered']
    #allocation3 [shape = 's32[1]{0}', space=sflag, size = 0x4, scoped, tag = 'scoped memory for tpu_custom_call.1']
    #allocation4 [shape = 's32[1]{0}', space=sflag, size = 0x4, scoped, tag = 'scoped memory for tpu_custom_call.1']
    #allocation5 [shape = 's32[1]{0}', space=sflag, size = 0x4, scoped, tag = 'scoped memory for tpu_custom_call.1']
    #allocation6 [shape = 'u8[1024]{0}', space=vmem, size = 0x400, scoped, tag = 'input window, operand 2, single buffered']
    #allocation7 [shape = 'u8[2048]{0}', space=vmem, size = 0x800, scoped, tag = 'output window, operand 0, single buffered']
    %9 = vsyncpa [#allocation5], 0
    %10 = vsyncpa [#allocation3], 0
    %11 = vsyncpa [#allocation4], 0
    // Predicated region
    $region2: #{tpu_custom_call.1} parent=1 // pred_check
      _
    $region3: #{tpu_custom_call.1} parent=1 // pred_check_branch
      %13 = sbr.rel (0) target = $region5
    $region4: #{tpu_custom_call.1} parent=1 // pred_region
      %s15 = ssub.s32 16, 16
      %16 = vsyncadd [#allocation5], %s15
      %19 = dma.hbm_to_smem %s0, 16, [#allocation2], [#allocation5]
    $region5: #{tpu_custom_call.1} parent=1 // pred_fallthru
      _
    // Predicated region
    $region6: #{tpu_custom_call.1} parent=1 // pred_check
      _
    $region7: #{tpu_custom_call.1} parent=1 // pred_check_branch
      %21 = sbr.rel (0) target = $region9
    $region8: #{tpu_custom_call.1} parent=1 // pred_region
      _
    $region9: #{tpu_custom_call.1} parent=1 // pred_fallthru
      _
    // Predicated region
    $region10: #{tpu_custom_call.1} parent=1 // pred_check
      _
    $region11: #{tpu_custom_call.1} parent=1 // pred_check_branch
      %23 = sbr.rel (0) target = $region13
    $region12: #{tpu_custom_call.1} parent=1 // pred_region
      %s25 = ssub.s32 32, 32
      %26 = vsyncadd [#allocation3], %s25
      %s28 = sshll.u32 [#allocation6], 4
      %s29 = int_to_ptr.vmem [resolvable:$true] %s28
      %31 = dma.hbm_to_vmem [thread:$0]  %s2, 32, %s29, [#allocation3]
    $region13: #{tpu_custom_call.1} parent=1 // pred_fallthru
      _
    // Predicated region
    $region14: #{tpu_custom_call.1} parent=1 // pred_check
      _
    $region15: #{tpu_custom_call.1} parent=1 // pred_check_branch
      %33 = sbr.rel (0) target = $region17
    $region16: #{tpu_custom_call.1} parent=1 // pred_region
      _
    $region17: #{tpu_custom_call.1} parent=1 // pred_fallthru
      _
    // Predicated region
    $region18: #{tpu_custom_call.1} parent=1 // pred_check
      _
    $region19: #{tpu_custom_call.1} parent=1 // pred_check_branch
      %35 = sbr.rel (0) target = $region21
    $region20: #{tpu_custom_call.1} parent=1 // pred_region
      %36 = dma.done [#allocation5], 16
    $region21: #{tpu_custom_call.1} parent=1 // pred_fallthru
      _
    // Predicated region
    $region22: #{tpu_custom_call.1} parent=1 // pred_check
      _
    $region23: #{tpu_custom_call.1} parent=1 // pred_check_branch
      %38 = sbr.rel (0) target = $region25
    $region24: #{tpu_custom_call.1} parent=1 // pred_region
      %39 = dma.done [#allocation3], 32
    $region25: #{tpu_custom_call.1} parent=1 // pred_fallthru
      _
    %40 = sfence
    %s41 = sld [smem:[#allocation2]]
    %s42 = sld [smem:[#allocation2 + $0x1]]
    %s43 = ssub.f32 1.0, %s41
    %s44 = ssub.f32 %s43, %s42
    %v45 = vld [vmem:[%s1] sm:$0x3]
    %v46 = vstv %s41
    %v47 = vmul.f32 %v46, %v45
    %v48 = vld [vmem:[#allocation6] sm:$0x3]
    %v49 = vstv %s42
    %v50 = vmul.f32 %v49, %v48
    %v51 = vadd.f32 %v47, %v50
    %v52 = vld [vmem:[%s3] sm:$0xf]
    %v53 = vstv %s44
    %v54 = vmul.f32 %v53, %v52
    %v56 = vlaneseq
    %v57 = vshrl.u32 %v56, 7
    %v58 = vsub.s32 0, %v57
    %v59 = vrot.slane %v51, %v58
    %v60 = vlaneseq
    %v61 = vshrl.u32 %v60, 7
    %v62 = vsub.s32 1, %v61
    %v63 = vrot.slane %v51, %v62
    %v68 = vunpack.c.l.s4 1983009808
    %v69 = vunpack.c.0.s8 %v68
    %v70 = vlaneseq
    %v71 = vshrl.u32 %v70, 7
    %v72 = vsub.s32 %v69, %v71
    %v73 = vrot.slane %v54, %v72
    %v74 = vcombine.high %v73, %v73
    %v77 = vadd.f32 %v59, %v73
    %v78 = vadd.f32 %v63, %v74
    %v81 = vcombine.low %v77, %v78
    %v83 = vunpack.c.l.s4 1983009808
    %v84 = vunpack.c.0.s8 %v83
    %v85 = vlaneseq
    %v86 = vshrl.u32 %v85, 7
    %v87 = vsub.s32 %v84, %v86
    %v88 = vrot.slane %v81, %v87
    %90 = vst [vmem:[#allocation7] sm:$0xf] %v88
    // Predicated region
    $region26: #{tpu_custom_call.1} parent=1 // pred_check
      _
    $region27: #{tpu_custom_call.1} parent=1 // pred_check_branch
      %92 = sbr.rel (0) target = $region29
    $region28: #{tpu_custom_call.1} parent=1 // pred_region
      %s94 = ssub.s32 64, 64
      %95 = vsyncadd [#allocation4], %s94
      %s97 = sshll.u32 [#allocation7], 4
      %s98 = int_to_ptr.vmem [resolvable:$true] %s97
      %100 = dma.vmem_to_hbm [thread:$0]  %s98, 64, %s4, [#allocation4]
    $region29: #{tpu_custom_call.1} parent=1 // pred_fallthru
      _
    // Predicated region
    $region30: #{tpu_custom_call.1} parent=1 // pred_check
      _
    $region31: #{tpu_custom_call.1} parent=1 // pred_check_branch
      %102 = sbr.rel (0) target = $region33
    $region32: #{tpu_custom_call.1} parent=1 // pred_region
      %103 = dma.done [#allocation4], 64
    $region33: #{tpu_custom_call.1} parent=1 // pred_fallthru
      _
    %104 = vsyncpa [#allocation3], 1
    %105 = vsyncpa [#allocation4], 1
    %106 = vsyncpa [#allocation5], 1

</llo_original>
